<compile_context>
chip_gen: v7x
topology: tpu7x:2x2x1
jax: 0.10.0
libtpu: 0.0.40
codegen_flags: <defaults>
</compile_context>

<pallas_src>
import functools

import numpy as np

import jax
import jax.numpy as jnp
from jax import lax
from jax.experimental import pallas as pl
from jax.experimental.pallas import tpu as pltpu

_EPS = 1e-5
_LANE = 128
_ROW_TILE = 1024                      # rows per block for elementwise / stats passes
_VMEM_LIMIT = 48 * 1024 * 1024        # headroom under v7x's 64 MiB physical VMEM


def _cdiv(a, b):
    return -(-a // b)


def _round_up(a, m):
    return _cdiv(a, m) * m


def _compiler_params(ngrid):
    return pltpu.CompilerParams(
        dimension_semantics=("parallel",) * ngrid,
        vmem_limit_bytes=_VMEM_LIMIT,
    )


# ---------------------------------------------------------------------------
# Kernels
# ---------------------------------------------------------------------------
def _conv_accumulate(x, w_ref, stride, out_h, out_w):
    """x: (Hp, out_w, 3*Cin) activations (compute dtype), kw-taps stacked on channels.
    w_ref: (3, 3*Cin, Cpad) weights (tap kh -> (3*Cin, Cpad)).
    Returns f32 (out_h*out_w, Cpad): conv output accumulated over the 3 kh taps."""
    c3 = x.shape[-1]
    cpad = w_ref.shape[-1]
    acc = jnp.zeros((out_h * out_w, cpad), jnp.float32)
    for kh in range(3):
        xk = x[kh:kh + stride * out_h]                          # leading-dim slice
        if stride > 1:
            xk = xk.reshape(out_h, stride, out_w, c3)[:, 0]     # leading-dim subsample
        pm = xk.reshape(out_h * out_w, c3)
        acc = acc + jnp.dot(pm, w_ref[kh], preferred_element_type=jnp.float32)
    return acc


def _conv_stats_kernel(xg_ref, w_ref, y_ref, sum_ref, ssq_ref, *,
                       stride, out_h, out_w):
    """Per-image conv (3 matmuls) + per-channel partial sum / sum-of-squares."""
    acc = _conv_accumulate(xg_ref[0], w_ref, stride, out_h, out_w)
    y_ref[0] = acc.astype(y_ref.dtype)
    sum_ref[0] = jnp.sum(acc, axis=0, keepdims=True)
    ssq_ref[0] = jnp.sum(acc * acc, axis=0, keepdims=True)


def _bnrelu_conv_kernel(xg_ref, w_ref, sc_ref, sh_ref, hm_ref, wm_ref, y_ref, *,
                        stride, out_h, out_w, compute_dtype):
    """preact path: fused BN(in_dim)+ReLU on the input tile, then the conv.
    hm/wm masks restore the conv's zero padding (BN(0) != 0)."""
    x = xg_ref[0].astype(jnp.float32)
    act = jnp.maximum(x * sc_ref[...] + sh_ref[...], 0.0)
    act = act * hm_ref[...] * wm_ref[...]
    acc = _conv_accumulate(act.astype(compute_dtype), w_ref, stride, out_h, out_w)
    y_ref[0] = acc.astype(y_ref.dtype)


def _scale_shift_relu_kernel(y_ref, sc_ref, sh_ref, o_ref):
    """Second BN pass: y*scale + shift, ReLU.  Tiled over M rows, lane-dense Cpad."""
    y = y_ref[...].astype(jnp.float32)
    o_ref[...] = jnp.maximum(y * sc_ref[...] + sh_ref[...], 0.0).astype(o_ref.dtype)


def _colstats_kernel(x_ref, sum_ref, ssq_ref, *, total_rows):
    """Per-tile per-channel sum / sum-of-squares (row-masked for ragged tails)."""
    tm = x_ref.shape[0]
    row0 = pl.program_id(0) * tm
    rows = lax.broadcasted_iota(jnp.int32, x_ref.shape, 0) + row0
    x = jnp.where(rows < total_rows, x_ref[...].astype(jnp.float32), 0.0)
    sum_ref[0] = jnp.sum(x, axis=0, keepdims=True)
    ssq_ref[0] = jnp.sum(x * x, axis=0, keepdims=True)


# ---------------------------------------------------------------------------
# pallas_call wrappers
# ---------------------------------------------------------------------------
def _conv_with_stats(xg, wstack, *, stride, out_h, out_w):
    n, hp, wo, c3 = xg.shape
    cpad = wstack.shape[-1]
    m = out_h * out_w
    kern = functools.partial(_conv_stats_kernel, stride=stride, out_h=out_h, out_w=out_w)
    return pl.pallas_call(
        kern,
        out_shape=(
            jax.ShapeDtypeStruct((n, m, cpad), jnp.float32),
            jax.ShapeDtypeStruct((n, 1, cpad), jnp.float32),
            jax.ShapeDtypeStruct((n, 1, cpad), jnp.float32),
        ),
        grid=(n,),
        in_specs=[
            pl.BlockSpec((1, hp, wo, c3), lambda i: (i, 0, 0, 0)),
            pl.BlockSpec((3, c3, cpad), lambda i: (0, 0, 0)),     # weights resident
        ],
        out_specs=(
            pl.BlockSpec((1, m, cpad), lambda i: (i, 0, 0)),
            pl.BlockSpec((1, 1, cpad), lambda i: (i, 0, 0)),
            pl.BlockSpec((1, 1, cpad), lambda i: (i, 0, 0)),
        ),
        compiler_params=_compiler_params(1),
    )(xg, wstack)


def _preact_conv(xg, wstack, scale3, shift3, hmask, wmask, *,
                 stride, out_h, out_w, compute_dtype):
    n, hp, wo, c3 = xg.shape
    cpad = wstack.shape[-1]
    m = out_h * out_w
    kern = functools.partial(_bnrelu_conv_kernel, stride=stride, out_h=out_h,
                             out_w=out_w, compute_dtype=compute_dtype)
    return pl.pallas_call(
        kern,
        out_shape=jax.ShapeDtypeStruct((n, m, cpad), jnp.float32),
        grid=(n,),
        in_specs=[
            pl.BlockSpec((1, hp, wo, c3), lambda i: (i, 0, 0, 0)),
            pl.BlockSpec((3, c3, cpad), lambda i: (0, 0, 0)),
            pl.BlockSpec((1, 1, c3), lambda i: (0, 0, 0)),        # BN scale (constant)
            pl.BlockSpec((1, 1, c3), lambda i: (0, 0, 0)),        # BN shift (constant)
            pl.BlockSpec((hp, 1, 1), lambda i: (0, 0, 0)),        # height padding mask
            pl.BlockSpec((1, wo, c3), lambda i: (0, 0, 0)),       # width padding mask
        ],
        out_specs=pl.BlockSpec((1, m, cpad), lambda i: (i, 0, 0)),
        compiler_params=_compiler_params(1),
    )(xg, wstack, scale3, shift3, hmask, wmask)


def _apply_scale_shift_relu(y_flat, scale, shift):
    m, cpad = y_flat.shape
    tm = min(_ROW_TILE, m)
    return pl.pallas_call(
        _scale_shift_relu_kernel,
        out_shape=jax.ShapeDtypeStruct((m, cpad), jnp.float32),
        grid=(_cdiv(m, tm),),
        in_specs=[
            pl.BlockSpec((tm, cpad), lambda i: (i, 0)),
            pl.BlockSpec((1, cpad), lambda i: (0, 0)),
            pl.BlockSpec((1, cpad), lambda i: (0, 0)),
        ],
        out_specs=pl.BlockSpec((tm, cpad), lambda i: (i, 0)),
        compiler_params=_compiler_params(1),
    )(y_flat, scale, shift)


def _column_stats(x_flat):
    m, c = x_flat.shape
    tm = min(_ROW_TILE, m)
    nt = _cdiv(m, tm)
    kern = functools.partial(_colstats_kernel, total_rows=m)
    psum, pssq = pl.pallas_call(
        kern,
        out_shape=(
            jax.ShapeDtypeStruct((nt, 1, c), jnp.float32),
            jax.ShapeDtypeStruct((nt, 1, c), jnp.float32),
        ),
        grid=(nt,),
        in_specs=[pl.BlockSpec((tm, c), lambda i: (i, 0))],
        out_specs=(
            pl.BlockSpec((1, 1, c), lambda i: (i, 0, 0)),
            pl.BlockSpec((1, 1, c), lambda i: (i, 0, 0)),
        ),
        compiler_params=_compiler_params(1),
    )(x_flat)
    return jnp.sum(psum, axis=(0, 1)), jnp.sum(pssq, axis=(0, 1))


# ---------------------------------------------------------------------------
# Host-side glue (padding, kw-tap gather, weight repack, masks)
# ---------------------------------------------------------------------------
def _gather_kw_taps(xp, stride, out_w, dtype):
    """xp: padded NHWC (N, Hp, Wp, Cin) ->  (N, Hp, out_w, 3*Cin); feature = kw*Cin + c."""
    taps = [xp[:, :, kw: kw + stride * (out_w - 1) + 1: stride, :] for kw in range(3)]
    return jnp.concatenate(taps, axis=-1).astype(dtype)


def _build_wstack(weight, cpad, dtype):
    """weight (Cout, Cin, 3, 3) -> (3, 3*Cin, Cpad); wstack[kh, kw*Cin+c, o] = w[o,c,kh,kw]."""
    cout, cin = weight.shape[0], weight.shape[1]
    per_kh = []
    for kh in range(3):
        wk = jnp.transpose(weight[:, :, kh, :], (2, 1, 0)).reshape(3 * cin, cout)
        per_kh.append(wk)
    w = jnp.stack(per_kh, axis=0)
    w = jnp.pad(w, ((0, 0), (0, 0), (0, cpad - cout)))        # lane-dense Cout padding
    return w.astype(dtype)


def _make_pad_masks(hp, h, w, out_w, cin, stride):
    """Masks that zero the conv's spatial zero-padding after in-kernel BN+ReLU."""
    hm = np.zeros((hp, 1, 1), np.float32)
    hm[1:h + 1] = 1.0
    wm = np.zeros((1, out_w, 3 * cin), np.float32)
    for kw in range(3):
        for wo in range(out_w):
            if 1 <= kw + stride * wo <= w:
                wm[0, wo, kw * cin:(kw + 1) * cin] = 1.0
    return jnp.asarray(hm), jnp.asarray(wm)


# ---------------------------------------------------------------------------
# Public entry point
# ---------------------------------------------------------------------------
@functools.partial(jax.jit, static_argnames=("pooling_factor", "preact", "compute_dtype"))
def convk3_stride_downsampling(x, weight, gamma, beta, *, pooling_factor, preact=False,
                               compute_dtype=jnp.bfloat16):
    """x: (N, Cin, H, W) f32 NCHW; weight: (Cout, Cin, 3, 3); gamma/beta: (Cbn,).
    Returns (N, Cout, Ho, Wo) f32 NCHW."""
    n, cin, h, w = x.shape
    cout = weight.shape[0]
    s = int(pooling_factor)
    out_h = (h + 2 - 3) // s + 1
    out_w = (w + 2 - 3) // s + 1
    cpad = _round_up(max(cout, _LANE), _LANE)
    c3 = 3 * cin

    # NHWC internal layout (one transpose in, one out — PyTorch interface is NCHW).
    x_nhwc = jnp.transpose(x, (0, 2, 3, 1))

    # Spatial zero-pad: +1 halo each side, plus extra bottom rows so the in-kernel
    # stride subsample always has stride*out_h rows to slice.
    hp = max(h + 2, 2 + s * out_h)
    xp = jnp.pad(x_nhwc, ((0, 0), (1, hp - h - 1), (1, 1), (0, 0)))

    wstack = _build_wstack(weight, cpad, compute_dtype)

    if preact:
        # BatchNorm2d(in_dim) batch stats over N*H*W (tiled Pallas reduction),
        # BN+ReLU fused into the conv kernel.
        x_flat = x_nhwc.reshape(n * h * w, cin)
        csum, cssq = _column_stats(x_flat)
        cnt = float(n * h * w)
        mu = csum / cnt
        var = jnp.maximum(cssq / cnt - mu * mu, 0.0)
        inv = lax.rsqrt(var + _EPS)
        scale_c = gamma.astype(jnp.float32) * inv
        shift_c = beta.astype(jnp.float32) - mu * scale_c
        scale3 = jnp.tile(scale_c, 3).reshape(1, 1, c3)
        shift3 = jnp.tile(shift_c, 3).reshape(1, 1, c3)

        hmask, wmask = _make_pad_masks(hp, h, w, out_w, cin, s)
        xg = _gather_kw_taps(xp, s, out_w, jnp.float32)   # BN applied in f32 in-kernel
        y = _preact_conv(xg, wstack, scale3, shift3, hmask, wmask,
                         stride=s, out_h=out_h, out_w=out_w, compute_dtype=compute_dtype)
        out_flat = y.reshape(n * out_h * out_w, cpad)
    else:
        # Conv pass (per-image grid) emitting per-channel partial sums, then a tiled
        # lane-dense BN-apply + ReLU pass (two-pass batch norm).
        xg = _gather_kw_taps(xp, s, out_w, compute_dtype)
        y, psum, pssq = _conv_with_stats(xg, wstack, stride=s, out_h=out_h, out_w=out_w)
        cnt = float(n * out_h * out_w)
        mu = jnp.sum(psum, axis=(0, 1)) / cnt
        var = jnp.maximum(jnp.sum(pssq, axis=(0, 1)) / cnt - mu * mu, 0.0)
        inv = lax.rsqrt(var + _EPS)
        gpad = jnp.pad(gamma.astype(jnp.float32), (0, cpad - cout))
        bpad = jnp.pad(beta.astype(jnp.float32), (0, cpad - cout))
        scale = (gpad * inv).reshape(1, cpad)
        shift = (bpad - mu * gpad * inv).reshape(1, cpad)
        out_flat = _apply_scale_shift_relu(y.reshape(n * out_h * out_w, cpad), scale, shift)

    out = out_flat[:, :cout].reshape(n, out_h, out_w, cout)
    return jnp.transpose(out, (0, 3, 1, 2))


# ---------------------------------------------------------------------------
# Pure-JAX reference (training-mode BN forward) for a sanity check
# ---------------------------------------------------------------------------
def _reference(x, weight, gamma, beta, *, pooling_factor, preact):
    def bn_relu(t, g, b):
        mu = jnp.mean(t, axis=(0, 2, 3), keepdims=True)
        var = jnp.mean(jnp.square(t - mu), axis=(0, 2, 3), keepdims=True)
        t = (t - mu) * lax.rsqrt(var + _EPS)
        t = t * g.reshape(1, -1, 1, 1) + b.reshape(1, -1, 1, 1)
        return jnp.maximum(t, 0.0)

    def conv(t):
        return lax.conv_general_dilated(
            t, weight, (pooling_factor, pooling_factor), ((1, 1), (1, 1)),
            dimension_numbers=("NCHW", "OIHW", "NCHW"))

    if preact:
        return conv(bn_relu(x, gamma, beta))
    return bn_relu(conv(x), gamma, beta)


# ---------------------------------------------------------------------------
if __name__ == "__main__":
    key = jax.random.PRNGKey(0)
    kx, kw_ = jax.random.split(key)

    N, Cin, H, W = 2, 4, 16, 16
    Cout, pooling_factor = 8, 2

    x = jax.random.normal(kx, (N, Cin, H, W), dtype=jnp.float32)
    weight = jax.random.normal(kw_, (Cout, Cin, 3, 3), dtype=jnp.float32) * 0.1

    # preact=False -> BatchNorm2d(out_dim)
    gamma = 1.0 + 0.1 * jnp.arange(Cout, dtype=jnp.float32)
    beta = 0.05 * jnp.arange(Cout, dtype=jnp.float32)
    out = convk3_stride_downsampling(x, weight, gamma, beta,
                                     pooling_factor=pooling_factor, preact=False)
    out = jax.block_until_ready(out)
    assert out.shape == (N, Cout, H // pooling_factor, W // pooling_factor)
    assert bool(jnp.all(jnp.isfinite(out)))
    ref = _reference(x, weight, gamma, beta, pooling_factor=pooling_factor, preact=False)
    assert bool(jnp.allclose(out, ref, atol=1e-1, rtol=1e-1))   # bf16-operand tolerance

    # preact=True -> BatchNorm2d(in_dim)
    gamma_in = 1.0 + 0.1 * jnp.arange(Cin, dtype=jnp.float32)
    beta_in = 0.05 * jnp.arange(Cin, dtype=jnp.float32)
    out_pre = convk3_stride_downsampling(x, weight, gamma_in, beta_in,
                                         pooling_factor=pooling_factor, preact=True)
    out_pre = jax.block_until_ready(out_pre)
    assert out_pre.shape == (N, Cout, H // pooling_factor, W // pooling_factor)
    assert bool(jnp.all(jnp.isfinite(out_pre)))
    ref_pre = _reference(x, weight, gamma_in, beta_in,
                         pooling_factor=pooling_factor, preact=True)
    assert bool(jnp.allclose(out_pre, ref_pre, atol=1e-1, rtol=1e-1))

    print("KERNEL_OK")
</pallas_src>

<mosaic_0001>
module attributes {stable_mosaic.version = 11 : i64} {
  func.func @_conv_stats_kernel(%arg0: i32, %arg1: memref<1x18x8x12xbf16, #tpu.memory_space<vmem>>, %arg2: memref<3x12x128xbf16, #tpu.memory_space<vmem>>, %arg3: memref<1x64x128xf32, #tpu.memory_space<vmem>>, %arg4: memref<1x1x128xf32, #tpu.memory_space<vmem>>, %arg5: memref<1x1x128xf32, #tpu.memory_space<vmem>>) attributes {dimension_semantics = [#tpu.dimension_semantics<parallel>], iteration_bounds = array<i64: 2>, scalar_prefetch = 0 : i64, scratch_operands = 0 : i64, tpu.core_type = #tpu.core_type<tc>, window_params = [{transform_indices = @transform_0, window_bounds = array<i64: 1, 18, 8, 12>}, {pipeline_mode = #tpu.pipeline_mode<synchronous>, transform_indices = @transform_1, window_bounds = array<i64: 3, 12, 128>}, {transform_indices = @transform_2, window_bounds = array<i64: 1, 64, 128>}, {transform_indices = @transform_3, window_bounds = array<i64: 1, 1, 128>}, {transform_indices = @transform_4, window_bounds = array<i64: 1, 1, 128>}]} {
    %c0 = arith.constant 0 : index
    %c0_0 = arith.constant 0 : index
    %c0_1 = arith.constant 0 : index
    %c0_2 = arith.constant 0 : index
    %0 = vector.load %arg1[%c0, %c0_0, %c0_1, %c0_2] : memref<1x18x8x12xbf16, #tpu.memory_space<vmem>>, vector<1x18x8x12xbf16>
    %1 = vector.shape_cast %0 : vector<1x18x8x12xbf16> to vector<18x8x12xbf16>
    %cst = arith.constant 0.000000e+00 : f32
    %2 = vector.broadcast %cst : f32 to vector<64x128xf32>
    %3 = vector.extract_strided_slice %1 {offsets = [0, 0, 0], sizes = [16, 8, 12], strides = [1, 1, 1]} : vector<18x8x12xbf16> to vector<16x8x12xbf16>
    %4 = vector.shape_cast %3 : vector<16x8x12xbf16> to vector<8x2x8x12xbf16>
    %5 = vector.extract_strided_slice %4 {offsets = [0, 0, 0, 0], sizes = [8, 1, 8, 12], strides = [1, 1, 1, 1]} : vector<8x2x8x12xbf16> to vector<8x1x8x12xbf16>
    %6 = vector.shape_cast %5 : vector<8x1x8x12xbf16> to vector<8x8x12xbf16>
    %7 = vector.shape_cast %6 : vector<8x8x12xbf16> to vector<64x12xbf16>
    %c0_3 = arith.constant 0 : index
    %c0_4 = arith.constant 0 : index
    %c0_5 = arith.constant 0 : index
    %8 = vector.load %arg2[%c0_3, %c0_4, %c0_5] : memref<3x12x128xbf16, #tpu.memory_space<vmem>>, vector<1x12x128xbf16>
    %9 = vector.shape_cast %8 : vector<1x12x128xbf16> to vector<12x128xbf16>
    %cst_6 = arith.constant dense<0.000000e+00> : vector<64x128xf32>
    %10 = tpu.matmul %7, %9, %cst_6 {dimension_numbers = #tpu.dot_dimension_numbers<[1], [0], [0], [1], [0, 0, 1, 1], [], []>} : vector<64x12xbf16>, vector<12x128xbf16>, vector<64x128xf32> -> vector<64x128xf32>
    %11 = arith.addf %2, %10 : vector<64x128xf32>
    %12 = vector.extract_strided_slice %1 {offsets = [1, 0, 0], sizes = [16, 8, 12], strides = [1, 1, 1]} : vector<18x8x12xbf16> to vector<16x8x12xbf16>
    %13 = vector.shape_cast %12 : vector<16x8x12xbf16> to vector<8x2x8x12xbf16>
    %14 = vector.extract_strided_slice %13 {offsets = [0, 0, 0, 0], sizes = [8, 1, 8, 12], strides = [1, 1, 1, 1]} : vector<8x2x8x12xbf16> to vector<8x1x8x12xbf16>
    %15 = vector.shape_cast %14 : vector<8x1x8x12xbf16> to vector<8x8x12xbf16>
    %16 = vector.shape_cast %15 : vector<8x8x12xbf16> to vector<64x12xbf16>
    %c1 = arith.constant 1 : index
    %c0_7 = arith.constant 0 : index
    %c0_8 = arith.constant 0 : index
    %17 = vector.load %arg2[%c1, %c0_7, %c0_8] : memref<3x12x128xbf16, #tpu.memory_space<vmem>>, vector<1x12x128xbf16>
    %18 = vector.shape_cast %17 : vector<1x12x128xbf16> to vector<12x128xbf16>
    %cst_9 = arith.constant dense<0.000000e+00> : vector<64x128xf32>
    %19 = tpu.matmul %16, %18, %cst_9 {dimension_numbers = #tpu.dot_dimension_numbers<[1], [0], [0], [1], [0, 0, 1, 1], [], []>} : vector<64x12xbf16>, vector<12x128xbf16>, vector<64x128xf32> -> vector<64x128xf32>
    %20 = arith.addf %11, %19 : vector<64x128xf32>
    %21 = vector.extract_strided_slice %1 {offsets = [2, 0, 0], sizes = [16, 8, 12], strides = [1, 1, 1]} : vector<18x8x12xbf16> to vector<16x8x12xbf16>
    %22 = vector.shape_cast %21 : vector<16x8x12xbf16> to vector<8x2x8x12xbf16>
    %23 = vector.extract_strided_slice %22 {offsets = [0, 0, 0, 0], sizes = [8, 1, 8, 12], strides = [1, 1, 1, 1]} : vector<8x2x8x12xbf16> to vector<8x1x8x12xbf16>
    %24 = vector.shape_cast %23 : vector<8x1x8x12xbf16> to vector<8x8x12xbf16>
    %25 = vector.shape_cast %24 : vector<8x8x12xbf16> to vector<64x12xbf16>
    %c2 = arith.constant 2 : index
    %c0_10 = arith.constant 0 : index
    %c0_11 = arith.constant 0 : index
    %26 = vector.load %arg2[%c2, %c0_10, %c0_11] : memref<3x12x128xbf16, #tpu.memory_space<vmem>>, vector<1x12x128xbf16>
    %27 = vector.shape_cast %26 : vector<1x12x128xbf16> to vector<12x128xbf16>
    %cst_12 = arith.constant dense<0.000000e+00> : vector<64x128xf32>
    %28 = tpu.matmul %25, %27, %cst_12 {dimension_numbers = #tpu.dot_dimension_numbers<[1], [0], [0], [1], [0, 0, 1, 1], [], []>} : vector<64x12xbf16>, vector<12x128xbf16>, vector<64x128xf32> -> vector<64x128xf32>
    %29 = arith.addf %20, %28 : vector<64x128xf32>
    %c0_13 = arith.constant 0 : index
    %c0_14 = arith.constant 0 : index
    %c0_15 = arith.constant 0 : index
    %30 = vector.load %arg3[%c0_13, %c0_14, %c0_15] : memref<1x64x128xf32, #tpu.memory_space<vmem>>, vector<1x64x128xf32>
    %31 = vector.shape_cast %30 : vector<1x64x128xf32> to vector<64x128xf32>
    %32 = vector.shape_cast %29 : vector<64x128xf32> to vector<1x64x128xf32>
    tpu.vector_store %arg3[%c0_13, %c0_14, %c0_15], %32 {strides = array<i32>} : memref<1x64x128xf32, #tpu.memory_space<vmem>>, vector<1x64x128xf32>,
    %cst_16 = arith.constant dense<0.000000e+00> : vector<128xf32>
    %33 = vector.multi_reduction <add>, %29, %cst_16 [0] : vector<64x128xf32> to vector<128xf32>
    %34 = vector.shape_cast %33 : vector<128xf32> to vector<1x128xf32>
    %c0_17 = arith.constant 0 : index
    %c0_18 = arith.constant 0 : index
    %c0_19 = arith.constant 0 : index
    %35 = vector.load %arg4[%c0_17, %c0_18, %c0_19] : memref<1x1x128xf32, #tpu.memory_space<vmem>>, vector<1x1x128xf32>
    %36 = vector.shape_cast %35 : vector<1x1x128xf32> to vector<1x128xf32>
    %37 = vector.shape_cast %34 : vector<1x128xf32> to vector<1x1x128xf32>
    tpu.vector_store %arg4[%c0_17, %c0_18, %c0_19], %37 {strides = array<i32>} : memref<1x1x128xf32, #tpu.memory_space<vmem>>, vector<1x1x128xf32>,
    %38 = arith.mulf %29, %29 : vector<64x128xf32>
    %cst_20 = arith.constant dense<0.000000e+00> : vector<128xf32>
    %39 = vector.multi_reduction <add>, %38, %cst_20 [0] : vector<64x128xf32> to vector<128xf32>
    %40 = vector.shape_cast %39 : vector<128xf32> to vector<1x128xf32>
    %c0_21 = arith.constant 0 : index
    %c0_22 = arith.constant 0 : index
    %c0_23 = arith.constant 0 : index
    %41 = vector.load %arg5[%c0_21, %c0_22, %c0_23] : memref<1x1x128xf32, #tpu.memory_space<vmem>>, vector<1x1x128xf32>
    %42 = vector.shape_cast %41 : vector<1x1x128xf32> to vector<1x128xf32>
    %43 = vector.shape_cast %40 : vector<1x128xf32> to vector<1x1x128xf32>
    tpu.vector_store %arg5[%c0_21, %c0_22, %c0_23], %43 {strides = array<i32>} : memref<1x1x128xf32, #tpu.memory_space<vmem>>, vector<1x1x128xf32>,
    return
  }
  func.func @transform_0(%arg0: i32) -> (i32, i32, i32, i32) {
    %c0_i32 = arith.constant 0 : i32
    %c0_i32_0 = arith.constant 0 : i32
    %c0_i32_1 = arith.constant 0 : i32
    %c0_i32_2 = arith.constant 0 : i32
    return %arg0, %c0_i32, %c0_i32_0, %c0_i32_1 : i32, i32, i32, i32
  }
  func.func @transform_1(%arg0: i32) -> (i32, i32, i32) {
    %c0_i32 = arith.constant 0 : i32
    %c0_i32_0 = arith.constant 0 : i32
    %c0_i32_1 = arith.constant 0 : i32
    %c0_i32_2 = arith.constant 0 : i32
    return %c0_i32, %c0_i32_0, %c0_i32_1 : i32, i32, i32
  }
  func.func @transform_2(%arg0: i32) -> (i32, i32, i32) {
    %c0_i32 = arith.constant 0 : i32
    %c0_i32_0 = arith.constant 0 : i32
    %c0_i32_1 = arith.constant 0 : i32
    return %arg0, %c0_i32, %c0_i32_0 : i32, i32, i32
  }
  func.func @transform_3(%arg0: i32) -> (i32, i32, i32) {
    %c0_i32 = arith.constant 0 : i32
    %c0_i32_0 = arith.constant 0 : i32
    %c0_i32_1 = arith.constant 0 : i32
    return %arg0, %c0_i32, %c0_i32_0 : i32, i32, i32
  }
  func.func @transform_4(%arg0: i32) -> (i32, i32, i32) {
    %c0_i32 = arith.constant 0 : i32
    %c0_i32_0 = arith.constant 0 : i32
    %c0_i32_1 = arith.constant 0 : i32
    return %arg0, %c0_i32, %c0_i32_0 : i32, i32, i32
  }
}

module attributes {stable_mosaic.version = 11 : i64} {
  func.func @_scale_shift_relu_kernel(%arg0: i32, %arg1: memref<128x128xf32, #tpu.memory_space<vmem>>, %arg2: memref<1x128xf32, #tpu.memory_space<vmem>>, %arg3: memref<1x128xf32, #tpu.memory_space<vmem>>, %arg4: memref<128x128xf32, #tpu.memory_space<vmem>>) attributes {dimension_semantics = [#tpu.dimension_semantics<parallel>], iteration_bounds = array<i64: 1>, scalar_prefetch = 0 : i64, scratch_operands = 0 : i64, tpu.core_type = #tpu.core_type<tc>, window_params = [{transform_indices = @transform_0, window_bounds = array<i64: 128, 128>}, {pipeline_mode = #tpu.pipeline_mode<synchronous>, transform_indices = @transform_1, window_bounds = array<i64: 1, 128>}, {pipeline_mode = #tpu.pipeline_mode<synchronous>, transform_indices = @transform_2, window_bounds = array<i64: 1, 128>}, {transform_indices = @transform_3, window_bounds = array<i64: 128, 128>}]} {
    %c0 = arith.constant 0 : index
    %c0_0 = arith.constant 0 : index
    %0 = vector.load %arg1[%c0, %c0_0] : memref<128x128xf32, #tpu.memory_space<vmem>>, vector<128x128xf32>
    %c0_1 = arith.constant 0 : index
    %c0_2 = arith.constant 0 : index
    %1 = vector.load %arg2[%c0_1, %c0_2] : memref<1x128xf32, #tpu.memory_space<vmem>>, vector<1x128xf32>
    %2 = vector.broadcast %1 : vector<1x128xf32> to vector<128x128xf32>
    %3 = arith.mulf %0, %2 : vector<128x128xf32>
    %c0_3 = arith.constant 0 : index
    %c0_4 = arith.constant 0 : index
    %4 = vector.load %arg3[%c0_3, %c0_4] : memref<1x128xf32, #tpu.memory_space<vmem>>, vector<1x128xf32>
    %5 = vector.broadcast %4 : vector<1x128xf32> to vector<128x128xf32>
    %6 = arith.addf %3, %5 : vector<128x128xf32>
    %cst = arith.constant 0.000000e+00 : f32
    %7 = vector.broadcast %cst : f32 to vector<128x128xf32>
    %8 = arith.maximumf %6, %7 : vector<128x128xf32>
    %c0_5 = arith.constant 0 : index
    %c0_6 = arith.constant 0 : index
    %9 = vector.load %arg4[%c0_5, %c0_6] : memref<128x128xf32, #tpu.memory_space<vmem>>, vector<128x128xf32>
    tpu.vector_store %arg4[%c0_5, %c0_6], %8 {strides = array<i32>} : memref<128x128xf32, #tpu.memory_space<vmem>>, vector<128x128xf32>,
    return
  }
  func.func @transform_0(%arg0: i32) -> (i32, i32) {
    %c0_i32 = arith.constant 0 : i32
    %c0_i32_0 = arith.constant 0 : i32
    return %arg0, %c0_i32 : i32, i32
  }
  func.func @transform_1(%arg0: i32) -> (i32, i32) {
    %c0_i32 = arith.constant 0 : i32
    %c0_i32_0 = arith.constant 0 : i32
    %c0_i32_1 = arith.constant 0 : i32
    return %c0_i32, %c0_i32_0 : i32, i32
  }
  func.func @transform_2(%arg0: i32) -> (i32, i32) {
    %c0_i32 = arith.constant 0 : i32
    %c0_i32_0 = arith.constant 0 : i32
    %c0_i32_1 = arith.constant 0 : i32
    return %c0_i32, %c0_i32_0 : i32, i32
  }
  func.func @transform_3(%arg0: i32) -> (i32, i32) {
    %c0_i32 = arith.constant 0 : i32
    %c0_i32_0 = arith.constant 0 : i32
    return %arg0, %c0_i32 : i32, i32
  }
}

</mosaic_0001>

<llo_original>
// kernel: convk3_stride_downsampling.3
$region0: #{convk3_stride_downsampling.3}
  #allocation0 [shape = 'u32[]', space=smem, size = 0x4, offset = 0x4, fixed_abs, tag = 'smem constant byte address 0x4 - core index']
  #allocation1 [shape = 'u32[144,128]{1,0:T(1,128)}', space=vmem, size = 0x12000, scoped, tag = 'internal scratch']
  %s0 = inlined_call_operand.vmem [shape: f32[128,128], index: 0, kind: input, shape index: {}]
  %s1 = inlined_call_operand.vmem [shape: f32[1,128], index: 1, kind: input, shape index: {}]
  %s2 = inlined_call_operand.vmem [shape: f32[1,128], index: 2, kind: input, shape index: {}]
  %s3 = inlined_call_operand.vmem [shape: f32[128,128], index: 3, kind: output, shape index: {}]
  %s4 = sld [smem:[#allocation0]]
  $region22: #{convk3_stride_downsampling.3} parent=0
    _
  %s6 = ssub.s32 1, %s4
  %s7 = scalar_select 0, %s6, %s4
  // Predicated region
  $region2: #{convk3_stride_downsampling.3} parent=0 // pred_check
    _
  $region3: #{convk3_stride_downsampling.3} parent=0 // pred_check_branch
    %9 = sbr.rel (0) target = $region5
  $region4: #{convk3_stride_downsampling.3} parent=0 // pred_region
    _
  $region5: #{convk3_stride_downsampling.3} parent=0 // pred_fallthru
    _
  // Predicated region
  $region6: #{convk3_stride_downsampling.3} parent=0 // pred_check
    _
  $region7: #{convk3_stride_downsampling.3} parent=0 // pred_check_branch
    %11 = sbr.rel (0) target = $region9
  $region8: #{convk3_stride_downsampling.3} parent=0 // pred_region
    _
  $region9: #{convk3_stride_downsampling.3} parent=0 // pred_fallthru
    _
  // Predicated region
  $region10: #{convk3_stride_downsampling.3} parent=0 // pred_check
    _
  $region11: #{convk3_stride_downsampling.3} parent=0 // pred_check_branch
    %13 = sbr.rel (0) target = $region13
  $region12: #{convk3_stride_downsampling.3} parent=0 // pred_region
    _
  $region13: #{convk3_stride_downsampling.3} parent=0 // pred_fallthru
    _
  %v14 = vld [vmem:[%s0] sm:$0xff]
  %v15 = vld [vmem:[%s0 + $0x8] sm:$0xff]
  %v16 = vld [vmem:[%s0 + $0x10] sm:$0xff]
  %v17 = vld [vmem:[%s0 + $0x18] sm:$0xff]
  %v18 = vld [vmem:[%s0 + $0x20] sm:$0xff]
  %v19 = vld [vmem:[%s0 + $0x28] sm:$0xff]
  %v20 = vld [vmem:[%s0 + $0x30] sm:$0xff]
  %v21 = vld [vmem:[%s0 + $0x38] sm:$0xff]
  %v22 = vld [vmem:[%s0 + $0x40] sm:$0xff]
  %v23 = vld [vmem:[%s0 + $0x48] sm:$0xff]
  %v24 = vld [vmem:[%s0 + $0x50] sm:$0xff]
  %v25 = vld [vmem:[%s0 + $0x58] sm:$0xff]
  %v26 = vld [vmem:[%s0 + $0x60] sm:$0xff]
  %v27 = vld [vmem:[%s0 + $0x68] sm:$0xff]
  %v28 = vld [vmem:[%s0 + $0x70] sm:$0xff]
  %v29 = vld [vmem:[%s0 + $0x78] sm:$0xff]
  %v30 = vld [vmem:[%s1] sm:$0x1]
  %v32 = vlaneseq
  %v33 = vshrl.u32 %v32, 7
  %v34 = vsub.s32 0, %v33
  %v35 = vrot.slane %v30, %v34
  %v37 = vmul.f32 %v14, %v35
  %v38 = vmul.f32 %v15, %v35
  %v39 = vmul.f32 %v16, %v35
  %v40 = vmul.f32 %v17, %v35
  %v41 = vmul.f32 %v18, %v35
  %v42 = vmul.f32 %v19, %v35
  %v43 = vmul.f32 %v20, %v35
  %v44 = vmul.f32 %v21, %v35
  %v45 = vmul.f32 %v22, %v35
  %v46 = vmul.f32 %v23, %v35
  %v47 = vmul.f32 %v24, %v35
  %v48 = vmul.f32 %v25, %v35
  %v49 = vmul.f32 %v26, %v35
  %v50 = vmul.f32 %v27, %v35
  %v51 = vmul.f32 %v28, %v35
  %v52 = vmul.f32 %v29, %v35
  %v53 = vld [vmem:[%s2] sm:$0x1]
  %v55 = vlaneseq
  %v56 = vshrl.u32 %v55, 7
  %v57 = vsub.s32 0, %v56
  %v58 = vrot.slane %v53, %v57
  %v60 = vadd.f32 %v37, %v58
  %v61 = vadd.f32 %v38, %v58
  %v62 = vadd.f32 %v39, %v58
  %v63 = vadd.f32 %v40, %v58
  %v64 = vadd.f32 %v41, %v58
  %v65 = vadd.f32 %v42, %v58
  %v66 = vadd.f32 %v43, %v58
  %v67 = vadd.f32 %v44, %v58
  %v68 = vadd.f32 %v45, %v58
  %v69 = vadd.f32 %v46, %v58
  %v70 = vadd.f32 %v47, %v58
  %v71 = vadd.f32 %v48, %v58
  %v72 = vadd.f32 %v49, %v58
  %v73 = vadd.f32 %v50, %v58
  %v74 = vadd.f32 %v51, %v58
  %v75 = vadd.f32 %v52, %v58
  %v76 = vmax.f32 %v60, 0.0
  %v77 = vmax.f32 %v61, 0.0
  %v78 = vmax.f32 %v62, 0.0
  %v79 = vmax.f32 %v63, 0.0
  %v80 = vmax.f32 %v64, 0.0
  %v81 = vmax.f32 %v65, 0.0
  %v82 = vmax.f32 %v66, 0.0
  %v83 = vmax.f32 %v67, 0.0
  %v84 = vmax.f32 %v68, 0.0
  %v85 = vmax.f32 %v69, 0.0
  %v86 = vmax.f32 %v70, 0.0
  %v87 = vmax.f32 %v71, 0.0
  %v88 = vmax.f32 %v72, 0.0
  %v89 = vmax.f32 %v73, 0.0
  %v90 = vmax.f32 %v74, 0.0
  %v91 = vmax.f32 %v75, 0.0
  %92 = vst [vmem:[%s3] sm:$0xff] %v76
  %93 = vst [vmem:[%s3 + $0x8] sm:$0xff] %v77
  %94 = vst [vmem:[%s3 + $0x10] sm:$0xff] %v78
  %95 = vst [vmem:[%s3 + $0x18] sm:$0xff] %v79
  %96 = vst [vmem:[%s3 + $0x20] sm:$0xff] %v80
  %97 = vst [vmem:[%s3 + $0x28] sm:$0xff] %v81
  %98 = vst [vmem:[%s3 + $0x30] sm:$0xff] %v82
  %99 = vst [vmem:[%s3 + $0x38] sm:$0xff] %v83
  %100 = vst [vmem:[%s3 + $0x40] sm:$0xff] %v84
  %101 = vst [vmem:[%s3 + $0x48] sm:$0xff] %v85
  %102 = vst [vmem:[%s3 + $0x50] sm:$0xff] %v86
  %103 = vst [vmem:[%s3 + $0x58] sm:$0xff] %v87
  %104 = vst [vmem:[%s3 + $0x60] sm:$0xff] %v88
  %105 = vst [vmem:[%s3 + $0x68] sm:$0xff] %v89
  %106 = vst [vmem:[%s3 + $0x70] sm:$0xff] %v90
  %107 = vst [vmem:[%s3 + $0x78] sm:$0xff] %v91
  // Predicated region
  $region14: #{convk3_stride_downsampling.3} parent=0 // pred_check
    _
  $region15: #{convk3_stride_downsampling.3} parent=0 // pred_check_branch
    %109 = sbr.rel (0) target = $region17
  $region16: #{convk3_stride_downsampling.3} parent=0 // pred_region
    _
  $region17: #{convk3_stride_downsampling.3} parent=0 // pred_fallthru
    _
  // Predicated region
  $region18: #{convk3_stride_downsampling.3} parent=0 // pred_check
    _
  $region19: #{convk3_stride_downsampling.3} parent=0 // pred_check_branch
    %111 = sbr.rel (0) target = $region21
  $region20: #{convk3_stride_downsampling.3} parent=0 // pred_region
    _
  $region21: #{convk3_stride_downsampling.3} parent=0 // pred_fallthru
    _

// kernel: convk3_stride_downsampling.2
$region0: #{convk3_stride_downsampling.2}
  #allocation0 [shape = 'u32[]', space=smem, size = 0x4, offset = 0x4, fixed_abs, tag = 'smem constant byte address 0x4 - core index']
  #allocation1 [shape = 'u32[144,128]{1,0:T(1,128)}', space=vmem, size = 0x12000, scoped, tag = 'internal scratch']
  %s0 = inlined_call_operand.vmem [shape: bf16[2,18,8,12], index: 0, kind: input, shape index: {}]
  %s1 = inlined_call_operand.vmem [shape: bf16[3,12,128], index: 1, kind: input, shape index: {}]
  %s2 = inlined_call_operand.vmem [shape: f32[2,64,128], index: 2, kind: output, shape index: {0}]
  %s3 = inlined_call_operand.vmem [shape: f32[2,1,128], index: 3, kind: output, shape index: {1}]
  %s4 = inlined_call_operand.vmem [shape: f32[2,1,128], index: 4, kind: output, shape index: {2}]
  %5 = xla_tuple %s2, %s3, %s4
  %s6 = sld [smem:[#allocation0]]
  $region57: #{convk3_stride_downsampling.2} parent=0
    _
  %s8 = ssub.s32 1, %s6
  %s9 = scalar_select 0, %s8, %s6
  loop: start=0, step=1, limit=4
  $region2: #{convk3_stride_downsampling.2} parent=0 // loop_pre_header
    _
  $region3: #{convk3_stride_downsampling.2} parent=0 // loop_header
    %s11 = sphi 0, %s15
    %p12 = scmp.ge.s32.totalorder %s11, 4
    %s21 = sphi 0, %s23
    %s24 = sphi 0, %s21
    %s25 = sphi 0, %s24
    %s41 = sphi 0, %s25
    %s45 = sphi 0, %s45
    %s47 = sphi 0, %s45
    %s48 = sphi 0, %s47
    %s62 = sphi 0, %s48
    %s68 = sphi 0, %s70
    %s71 = sphi 0, %s68
    %s72 = sphi 0, %s71
    %s88 = sphi 0, %s72
    %s94 = sphi 0, %s96
    %s97 = sphi 0, %s94
    %s98 = sphi 0, %s97
    %s114 = sphi 0, %s98
    %s120 = sphi 0, %s122
    %s123 = sphi 0, %s120
    %s124 = sphi 0, %s123
    %s140 = sphi 0, %s124
  $region4: #{convk3_stride_downsampling.2} parent=0 // loop_header_branch
    %14 = sbr.rel (%p12) target = $region8
  $region5: #{convk3_stride_downsampling.2} parent=0 // loop_body
    %s16 = ssub.s32 %s11, 1
    %s17 = ssub.s32 %s11, 2
    %s18 = sadd.s32 %s11, 1
    %s19 = ssub.s32 %s11, %s18
    %p20 = scmp.eq.s32.totalorder %s19, 0
    %s22 = sadd.s32 %s21, 1
    %s23 = scalar_select %p20, %s21, %s22
    %p26 = pneg %p20
    %p27 = scmp.eq.s32.totalorder %s11, 1
    %p28 = por %p26, %p27
    %p29 = scmp.ne.s32.totalorder %s21, %s24
    %p30 = scmp.eq.s32.totalorder %s11, 0
    %p31 = por %p29, %p30
    %p32 = scmp.ne.s32.totalorder %s21, %s24
    %p33 = scmp.eq.s32.totalorder %s16, 1
    %p34 = por %p32, %p33
    %p35 = scmp.ne.s32.totalorder %s24, %s25
    %p36 = scmp.eq.s32.totalorder %s16, 0
    %p37 = por %p35, %p36
    %p38 = scmp.ne.s32.totalorder %s24, %s25
    %p39 = scmp.eq.s32.totalorder %s17, 1
    %p40 = por %p38, %p39
    %p42 = scmp.ne.s32.totalorder %s25, %s41
    %p43 = scmp.eq.s32.totalorder %s17, 0
    %p44 = por %p42, %p43
    %s46 = sadd.s32 %s45, 1
    %p49 = scmp.eq.s32.totalorder %s11, 1
    %p50 = scmp.ne.s32.totalorder %s45, %s47
    %p51 = scmp.eq.s32.totalorder %s11, 0
    %p52 = por %p50, %p51
    %p53 = scmp.ne.s32.totalorder %s45, %s47
    %p54 = scmp.eq.s32.totalorder %s16, 1
    %p55 = por %p53, %p54
    %p56 = scmp.ne.s32.totalorder %s47, %s48
    %p57 = scmp.eq.s32.totalorder %s16, 0
    %p58 = por %p56, %p57
    %p59 = scmp.ne.s32.totalorder %s47, %s48
    %p60 = scmp.eq.s32.totalorder %s17, 1
    %p61 = por %p59, %p60
    %p63 = scmp.ne.s32.totalorder %s48, %s62
    %p64 = scmp.eq.s32.totalorder %s17, 0
    %p65 = por %p63, %p64
    %s66 = ssub.s32 %s11, %s18
    %p67 = scmp.eq.s32.totalorder %s66, 0
    %s69 = sadd.s32 %s68, 1
    %s70 = scalar_select %p67, %s68, %s69
    %p73 = pneg %p67
    %p74 = scmp.eq.s32.totalorder %s11, 1
    %p75 = por %p73, %p74
    %p76 = scmp.ne.s32.totalorder %s68, %s71
    %p77 = scmp.eq.s32.totalorder %s11, 0
    %p78 = por %p76, %p77
    %p79 = scmp.ne.s32.totalorder %s68, %s71
    %p80 = scmp.eq.s32.totalorder %s16, 1
    %p81 = por %p79, %p80
    %p82 = scmp.ne.s32.totalorder %s71, %s72
    %p83 = scmp.eq.s32.totalorder %s16, 0
    %p84 = por %p82, %p83
    %p85 = scmp.ne.s32.totalorder %s71, %s72
    %p86 = scmp.eq.s32.totalorder %s17, 1
    %p87 = por %p85, %p86
    %p89 = scmp.ne.s32.totalorder %s72, %s88
    %p90 = scmp.eq.s32.totalorder %s17, 0
    %p91 = por %p89, %p90
    %s92 = ssub.s32 %s11, %s18
    %p93 = scmp.eq.s32.totalorder %s92, 0
    %s95 = sadd.s32 %s94, 1
    %s96 = scalar_select %p93, %s94, %s95
    %p99 = pneg %p93
    %p100 = scmp.eq.s32.totalorder %s11, 1
    %p101 = por %p99, %p100
    %p102 = scmp.ne.s32.totalorder %s94, %s97
    %p103 = scmp.eq.s32.totalorder %s11, 0
    %p104 = por %p102, %p103
    %p105 = scmp.ne.s32.totalorder %s94, %s97
    %p106 = scmp.eq.s32.totalorder %s16, 1
    %p107 = por %p105, %p106
    %p108 = scmp.ne.s32.totalorder %s97, %s98
    %p109 = scmp.eq.s32.totalorder %s16, 0
    %p110 = por %p108, %p109
    %p111 = scmp.ne.s32.totalorder %s97, %s98
    %p112 = scmp.eq.s32.totalorder %s17, 1
    %p113 = por %p111, %p112
    %p115 = scmp.ne.s32.totalorder %s98, %s114
    %p116 = scmp.eq.s32.totalorder %s17, 0
    %p117 = por %p115, %p116
    %s118 = ssub.s32 %s11, %s18
    %p119 = scmp.eq.s32.totalorder %s118, 0
    %s121 = sadd.s32 %s120, 1
    %s122 = scalar_select %p119, %s120, %s121
    %p125 = pneg %p119
    %p126 = scmp.eq.s32.totalorder %s11, 1
    %p127 = por %p125, %p126
    %p128 = scmp.ne.s32.totalorder %s120, %s123
    %p129 = scmp.eq.s32.totalorder %s11, 0
    %p130 = por %p128, %p129
    %p131 = scmp.ne.s32.totalorder %s120, %s123
    %p132 = scmp.eq.s32.totalorder %s16, 1
    %p133 = por %p131, %p132
    %p134 = scmp.ne.s32.totalorder %s123, %s124
    %p135 = scmp.eq.s32.totalorder %s16, 0
    %p136 = por %p134, %p135
    %p137 = scmp.ne.s32.totalorder %s123, %s124
    %p138 = scmp.eq.s32.totalorder %s17, 1
    %p139 = por %p137, %p138
    %p141 = scmp.ne.s32.totalorder %s124, %s140
    %p142 = scmp.eq.s32.totalorder %s17, 0
    %p143 = por %p141, %p142
    %p144 = scmp.le.s32.totalorder 1, %s11
    %p145 = scmp.lt.s32.totalorder %s11, 3
    %p146 = pnand %p144, %p145
    %p147 = pneg %p146
    // Predicated region
    $region9: #{convk3_stride_downsampling.2} parent=5 // pred_check
      _
    $region10: #{convk3_stride_downsampling.2} parent=5 // pred_check_branch
      %149 = sbr.rel (%p146) target = $region12
    $region11: #{convk3_stride_downsampling.2} parent=5 // pred_region
      %s150 = ssub.s32 %s11, 1
      // Predicated region
      $region13: #{convk3_stride_downsampling.2} parent=11 // pred_check
        %p151 = pneg %p58
      $region14: #{convk3_stride_downsampling.2} parent=11 // pred_check_branch
        %153 = sbr.rel (%p151) target = $region16
      $region15: #{convk3_stride_downsampling.2} parent=11 // pred_region
        _
      $region16: #{convk3_stride_downsampling.2} parent=11 // pred_fallthru
        _
    $region12: #{convk3_stride_downsampling.2} parent=5 // pred_fallthru
      _
    %p154 = scmp.lt.s32.totalorder %s11, 2
    // Predicated region
    $region17: #{convk3_stride_downsampling.2} parent=5 // pred_check
      %p155 = pneg %p154
    $region18: #{convk3_stride_downsampling.2} parent=5 // pred_check_branch
      %157 = sbr.rel (%p155) target = $region20
    $region19: #{convk3_stride_downsampling.2} parent=5 // pred_region
      // Predicated region
      $region21: #{convk3_stride_downsampling.2} parent=19 // pred_check
        %p158 = pneg %p31
      $region22: #{convk3_stride_downsampling.2} parent=19 // pred_check_branch
        %160 = sbr.rel (%p158) target = $region24
      $region23: #{convk3_stride_downsampling.2} parent=19 // pred_region
        %p161 = scmp.lt.s32.totalorder %s11, 1
        %s162 = scalar_select %p161, %s11, 1
        %s163 = smul.addr %s162, 18
        %s164 = smul.addr %s163, 4
        %s165 = scalar_lea.vmem %s0, %s164
      $region24: #{convk3_stride_downsampling.2} parent=19 // pred_fallthru
        _
    $region20: #{convk3_stride_downsampling.2} parent=5 // pred_fallthru
      _
    %p166 = scmp.le.s32.totalorder 1, %s11
    %p167 = scmp.lt.s32.totalorder %s11, 3
    %p168 = pnand %p166, %p167
    %p169 = pneg %p168
    // Predicated region
    $region25: #{convk3_stride_downsampling.2} parent=5 // pred_check
      _
    $region26: #{convk3_stride_downsampling.2} parent=5 // pred_check_branch
      %171 = sbr.rel (%p168) target = $region28
    $region27: #{convk3_stride_downsampling.2} parent=5 // pred_region
      %s172 = ssub.s32 %s11, 1
      %p173 = scmp.lt.s32.totalorder %s16, 1
      %s174 = scalar_select %p173, %s16, 1
      %s175 = smul.addr %s174, 18
      %s176 = smul.addr %s175, 4
      %s177 = scalar_lea.vmem %s0, %s176
      %p178 = pneg %p37
      %p179 = pneg %p34
      %p180 = pneg %p58
      %p181 = pneg %p55
      %p182 = pneg %p84
      %p183 = pneg %p81
      %p184 = scmp.lt.s32.totalorder %s16, 1
      %s185 = scalar_select %p184, %s16, 1
      %s186 = smul.addr %s185, 8
      %s187 = smul.addr %s186, 8
      %s188 = scalar_lea.vmem %s2, %s187
      %p189 = pneg %p110
      %p190 = pneg %p107
      %p191 = scmp.lt.s32.totalorder %s16, 1
      %s192 = scalar_select %p191, %s16, 1
      %s193 = scalar_lea.vmem %s3, %s192
      %p194 = pneg %p136
      %p195 = pneg %p133
      %p196 = scmp.lt.s32.totalorder %s16, 1
      %s197 = scalar_select %p196, %s16, 1
      %s198 = scalar_lea.vmem %s4, %s197
      %p199 = scmp.lt.s32.totalorder %s16, 1
      %s200 = scalar_select %p199, %s16, 1
      %s201 = smul.addr %s200, 18
      %s202 = smul.addr %s201, 4
      %s203 = scalar_lea.vmem %s0, %s202
      %p204 = scmp.lt.s32.totalorder %s16, 1
      %s205 = scalar_select %p204, %s16, 1
      %s206 = smul.addr %s205, 8
      %s207 = smul.addr %s206, 8
      %s208 = scalar_lea.vmem %s2, %s207
      %p209 = scmp.lt.s32.totalorder %s16, 1
      %s210 = scalar_select %p209, %s16, 1
      %s211 = scalar_lea.vmem %s3, %s210
      %p212 = scmp.lt.s32.totalorder %s16, 1
      %s213 = scalar_select %p212, %s16, 1
      %s214 = scalar_lea.vmem %s4, %s213
      %v216 = vld [vmem:[%s203] sm:$0xf]
      %v217 = vld [vmem:[%s203 + $0x4] sm:$0xf]
      %v218 = vld [vmem:[%s203 + $0x8] sm:$0xf]
      %v219 = vld [vmem:[%s203 + $0xc] sm:$0xf]
      %v220 = vld [vmem:[%s203 + $0x10] sm:$0xf]
      %v221 = vld [vmem:[%s203 + $0x14] sm:$0xf]
      %v222 = vld [vmem:[%s203 + $0x18] sm:$0xf]
      %v223 = vld [vmem:[%s203 + $0x1c] sm:$0xf]
      %v224 = vld [vmem:[%s203 + $0x20] sm:$0xf]
      %v225 = vld [vmem:[%s203 + $0x24] sm:$0xf]
      %v226 = vld [vmem:[%s203 + $0x28] sm:$0xf]
      %v227 = vld [vmem:[%s203 + $0x2c] sm:$0xf]
      %v228 = vld [vmem:[%s203 + $0x30] sm:$0xf]
      %v229 = vld [vmem:[%s203 + $0x34] sm:$0xf]
      %v230 = vld [vmem:[%s203 + $0x38] sm:$0xf]
      %v231 = vld [vmem:[%s203 + $0x3c] sm:$0xf]
      %v232 = vld [vmem:[%s203 + $0x40] sm:$0xf]
      %v233 = vld [vmem:[%s1] sm:$0xf]
      %v234 = vld [vmem:[%s1 + $0x4] sm:$0x3]
      %s235 = scalar_lea.vmem %s1, 8
      %v236 = vld [vmem:[%s235] sm:$0xf]
      %v237 = vld [vmem:[%s235 + $0x4] sm:$0x3]
      %v246 = vunpack.c.l.b16 %v217
      %v247 = vunpack.c.l.b16 %v219
      %v248 = vunpack.c.l.b16 %v221
      %v249 = vunpack.c.l.b16 %v223
      %v250 = vunpack.c.l.b16 %v225
      %v251 = vunpack.c.l.b16 %v227
      %v252 = vunpack.c.l.b16 %v229
      %v253 = vunpack.c.l.b16 %v231
      %v254 = vpack.c.b16 %v247, %v246
      %v255 = vpack.c.b16 %v249, %v248
      %v256 = vpack.c.b16 %v251, %v250
      %v257 = vpack.c.b16 %v253, %v252
      %v260 = vunpack.c.l.b16 %v236
      %v261 = vunpack.c.l.b16 %v237
      %v262 = vpack.c.b16 %v261, %v260
      %vm263 = vcmask 97280
      %v265 = vsel %vm263, %v254, 0
      %v268 = vsel %vm263, %v255, 0
      %v271 = vsel %vm263, %v256, 0
      %v274 = vsel %vm263, %v257, 0
      %vm276 = vcmask 1045504
      %v278 = vsel %vm276, %v262, 0
      %280 = vmatprep.subr.bf16.mxu0 0
      %281 = vmatpush1.bf16.msra.mxu0 %v278
      %282 = vmatprep.subr.bf16.mxu0 0
      %283 = vmatpush1.bf16.msra.mxu0 0
      %284 = vmatprep.subr.bf16.mxu0 0
      %285 = vmatpush1.bf16.msra.mxu0 0
      %286 = vmatprep.subr.bf16.mxu0 0
      %287 = vmatpush1.bf16.msra.mxu0 0
      %288 = vmatprep.subr.bf16.mxu0 0
      %289 = vmatpush1.bf16.msra.mxu0 0
      %290 = vmatprep.subr.bf16.mxu0 0
      %291 = vmatpush1.bf16.msra.mxu0 0
      %292 = vmatprep.subr.bf16.mxu0 0
      %293 = vmatpush1.bf16.msra.mxu0 0
      %294 = vmatprep.subr.bf16.mxu0 0
      %295 = vmatpush1.bf16.msra.mxu0 0
      %296 = vmatprep.subr.bf16.mxu0 0
      %297 = vmatpush1.bf16.msra.mxu0 0
      %298 = vmatprep.subr.bf16.mxu0 0
      %299 = vmatpush1.bf16.msra.mxu0 0
      %300 = vmatprep.subr.bf16.mxu0 0
      %301 = vmatpush1.bf16.msra.mxu0 0
      %302 = vmatprep.subr.bf16.mxu0 0
      %303 = vmatpush1.bf16.msra.mxu0 0
      %304 = vmatprep.subr.bf16.mxu0 0
      %305 = vmatpush1.bf16.msra.mxu0 0
      %306 = vmatprep.subr.bf16.mxu0 0
      %307 = vmatpush1.bf16.msra.mxu0 0
      %308 = vmatprep.subr.bf16.mxu0 0
      %309 = vmatpush1.bf16.msra.mxu0 0
      %310 = vmatprep.subr.bf16.mxu0 0
      %311 = vmatpush1.bf16.msra.mxu0 0
      %312 = vmatprep.mubr.bf16.mxu0 0
      %313 = vmatmul.mubr.bf16.gmra.mrb[0].mxu0 %v265
      %v314 = vpop.f32.mrb[0].mxu0
      %v315 = vadd.f32 0.0, %v314
      %v316 = vpop.f32.mrb[0].mxu0
      %v317 = vpop.f32.mrb[0].mxu0
      %v318 = vadd.f32 0.0, %v317
      %v319 = vpop.f32.mrb[0].mxu0
      %320 = vmatprep.mubr.bf16.mxu0 0
      %321 = vmatmul.mubr.bf16.gmra.mrb[0].mxu0 %v268
      %v322 = vpop.f32.mrb[0].mxu0
      %v323 = vadd.f32 0.0, %v322
      %v324 = vpop.f32.mrb[0].mxu0
      %v325 = vpop.f32.mrb[0].mxu0
      %v326 = vadd.f32 0.0, %v325
      %v327 = vpop.f32.mrb[0].mxu0
      %328 = vmatprep.mubr.bf16.mxu0 0
      %329 = vmatmul.mubr.bf16.gmra.mrb[0].mxu0 %v271
      %v330 = vpop.f32.mrb[0].mxu0
      %v331 = vadd.f32 0.0, %v330
      %v332 = vpop.f32.mrb[0].mxu0
      %v333 = vpop.f32.mrb[0].mxu0
      %v334 = vadd.f32 0.0, %v333
      %v335 = vpop.f32.mrb[0].mxu0
      %336 = vmatprep.mubr.bf16.mxu0 0
      %337 = vmatmul.mubr.bf16.gmra.mrb[0].mxu0 %v274
      %v338 = vpop.f32.mrb[0].mxu0
      %v339 = vadd.f32 0.0, %v338
      %v340 = vpop.f32.mrb[0].mxu0
      %v341 = vpop.f32.mrb[0].mxu0
      %v342 = vadd.f32 0.0, %v341
      %v343 = vpop.f32.mrb[0].mxu0
      %344 = vdwg.mxu0
      %v353 = vunpack.c.l.b16 %v216
      %v354 = vunpack.c.l.b16 %v218
      %v355 = vunpack.c.l.b16 %v220
      %v356 = vunpack.c.l.b16 %v222
      %v357 = vunpack.c.l.b16 %v224
      %v358 = vunpack.c.l.b16 %v226
      %v359 = vunpack.c.l.b16 %v228
      %v360 = vunpack.c.l.b16 %v230
      %v361 = vpack.c.b16 %v354, %v353
      %v362 = vpack.c.b16 %v356, %v355
      %v363 = vpack.c.b16 %v358, %v357
      %v364 = vpack.c.b16 %v360, %v359
      %v367 = vunpack.c.l.b16 %v233
      %v368 = vunpack.c.l.b16 %v234
      %v369 = vpack.c.b16 %v368, %v367
      %v371 = vsel %vm263, %v361, 0
      %v374 = vsel %vm263, %v362, 0
      %v377 = vsel %vm263, %v363, 0
      %v380 = vsel %vm263, %v364, 0
      %v383 = vsel %vm276, %v369, 0
      %385 = vmatprep.subr.bf16.mxu0 0
      %386 = vmatpush1.bf16.msra.mxu0 %v383
      %387 = vmatprep.subr.bf16.mxu0 0
      %388 = vmatpush1.bf16.msra.mxu0 0
      %389 = vmatprep.subr.bf16.mxu0 0
      %390 = vmatpush1.bf16.msra.mxu0 0
      %391 = vmatprep.subr.bf16.mxu0 0
      %392 = vmatpush1.bf16.msra.mxu0 0
      %393 = vmatprep.subr.bf16.mxu0 0
      %394 = vmatpush1.bf16.msra.mxu0 0
      %395 = vmatprep.subr.bf16.mxu0 0
      %396 = vmatpush1.bf16.msra.mxu0 0
      %397 = vmatprep.subr.bf16.mxu0 0
      %398 = vmatpush1.bf16.msra.mxu0 0
      %399 = vmatprep.subr.bf16.mxu0 0
      %400 = vmatpush1.bf16.msra.mxu0 0
      %401 = vmatprep.subr.bf16.mxu0 0
      %402 = vmatpush1.bf16.msra.mxu0 0
      %403 = vmatprep.subr.bf16.mxu0 0
      %404 = vmatpush1.bf16.msra.mxu0 0
      %405 = vmatprep.subr.bf16.mxu0 0
      %406 = vmatpush1.bf16.msra.mxu0 0
      %407 = vmatprep.subr.bf16.mxu0 0
      %408 = vmatpush1.bf16.msra.mxu0 0
      %409 = vmatprep.subr.bf16.mxu0 0
      %410 = vmatpush1.bf16.msra.mxu0 0
      %411 = vmatprep.subr.bf16.mxu0 0
      %412 = vmatpush1.bf16.msra.mxu0 0
      %413 = vmatprep.subr.bf16.mxu0 0
      %414 = vmatpush1.bf16.msra.mxu0 0
      %415 = vmatprep.subr.bf16.mxu0 0
      %416 = vmatpush1.bf16.msra.mxu0 0
      %417 = vmatprep.mubr.bf16.mxu0 0
      %418 = vmatmul.mubr.bf16.gmra.mrb[0].mxu0 %v371
      %v419 = vpop.f32.mrb[0].mxu0
      %v420 = vadd.f32 %v315, %v419
      %v421 = vpop.f32.mrb[0].mxu0
      %v422 = vpop.f32.mrb[0].mxu0
      %v423 = vadd.f32 %v318, %v422
      %v424 = vpop.f32.mrb[0].mxu0
      %425 = vmatprep.mubr.bf16.mxu0 0
      %426 = vmatmul.mubr.bf16.gmra.mrb[0].mxu0 %v374
      %v427 = vpop.f32.mrb[0].mxu0
      %v428 = vadd.f32 %v323, %v427
      %v429 = vpop.f32.mrb[0].mxu0
      %v430 = vpop.f32.mrb[0].mxu0
      %v431 = vadd.f32 %v326, %v430
      %v432 = vpop.f32.mrb[0].mxu0
      %433 = vmatprep.mubr.bf16.mxu0 0
      %434 = vmatmul.mubr.bf16.gmra.mrb[0].mxu0 %v377
      %v435 = vpop.f32.mrb[0].mxu0
      %v436 = vadd.f32 %v331, %v435
      %v437 = vpop.f32.mrb[0].mxu0
      %v438 = vpop.f32.mrb[0].mxu0
      %v439 = vadd.f32 %v334, %v438
      %v440 = vpop.f32.mrb[0].mxu0
      %441 = vmatprep.mubr.bf16.mxu0 0
      %442 = vmatmul.mubr.bf16.gmra.mrb[0].mxu0 %v380
      %v443 = vpop.f32.mrb[0].mxu0
      %v444 = vadd.f32 %v339, %v443
      %v445 = vpop.f32.mrb[0].mxu0
      %v446 = vpop.f32.mrb[0].mxu0
      %v447 = vadd.f32 %v342, %v446
      %v448 = vpop.f32.mrb[0].mxu0
      %449 = vdwg.mxu0
      %s450 = scalar_lea.vmem %s1, 16
      %v451 = vld [vmem:[%s450] sm:$0xf]
      %v452 = vld [vmem:[%s450 + $0x4] sm:$0x3]
      %v454 = vunpack.c.l.b16 %v232
      %v455 = vpack.c.b16 %v355, %v354
      %v456 = vpack.c.b16 %v357, %v356
      %v457 = vpack.c.b16 %v359, %v358
      %v458 = vpack.c.b16 %v454, %v360
      %v461 = vunpack.c.l.b16 %v451
      %v462 = vunpack.c.l.b16 %v452
      %v463 = vpack.c.b16 %v462, %v461
      %v465 = vsel %vm263, %v455, 0
      %v468 = vsel %vm263, %v456, 0
      %v471 = vsel %vm263, %v457, 0
      %v474 = vsel %vm263, %v458, 0
      %v477 = vsel %vm276, %v463, 0
      %479 = vmatprep.subr.bf16.mxu0 0
      %480 = vmatpush1.bf16.msra.mxu0 %v477
      %481 = vmatprep.subr.bf16.mxu0 0
      %482 = vmatpush1.bf16.msra.mxu0 0
      %483 = vmatprep.subr.bf16.mxu0 0
      %484 = vmatpush1.bf16.msra.mxu0 0
      %485 = vmatprep.subr.bf16.mxu0 0
      %486 = vmatpush1.bf16.msra.mxu0 0
      %487 = vmatprep.subr.bf16.mxu0 0
      %488 = vmatpush1.bf16.msra.mxu0 0
      %489 = vmatprep.subr.bf16.mxu0 0
      %490 = vmatpush1.bf16.msra.mxu0 0
      %491 = vmatprep.subr.bf16.mxu0 0
      %492 = vmatpush1.bf16.msra.mxu0 0
      %493 = vmatprep.subr.bf16.mxu0 0
      %494 = vmatpush1.bf16.msra.mxu0 0
      %495 = vmatprep.subr.bf16.mxu0 0
      %496 = vmatpush1.bf16.msra.mxu0 0
      %497 = vmatprep.subr.bf16.mxu0 0
      %498 = vmatpush1.bf16.msra.mxu0 0
      %499 = vmatprep.subr.bf16.mxu0 0
      %500 = vmatpush1.bf16.msra.mxu0 0
      %501 = vmatprep.subr.bf16.mxu0 0
      %502 = vmatpush1.bf16.msra.mxu0 0
      %503 = vmatprep.subr.bf16.mxu0 0
      %504 = vmatpush1.bf16.msra.mxu0 0
      %505 = vmatprep.subr.bf16.mxu0 0
      %506 = vmatpush1.bf16.msra.mxu0 0
      %507 = vmatprep.subr.bf16.mxu0 0
      %508 = vmatpush1.bf16.msra.mxu0 0
      %509 = vmatprep.subr.bf16.mxu0 0
      %510 = vmatpush1.bf16.msra.mxu0 0
      %511 = vmatprep.mubr.bf16.mxu0 0
      %512 = vmatmul.mubr.bf16.gmra.mrb[0].mxu0 %v465
      %v513 = vpop.f32.mrb[0].mxu0
      %v514 = vadd.f32 0.0, %v513
      %v515 = vpop.f32.mrb[0].mxu0
      %v516 = vpop.f32.mrb[0].mxu0
      %v517 = vadd.f32 0.0, %v516
      %v518 = vpop.f32.mrb[0].mxu0
      %519 = vmatprep.mubr.bf16.mxu0 0
      %520 = vmatmul.mubr.bf16.gmra.mrb[0].mxu0 %v468
      %v521 = vpop.f32.mrb[0].mxu0
      %v522 = vadd.f32 0.0, %v521
      %v523 = vpop.f32.mrb[0].mxu0
      %v524 = vpop.f32.mrb[0].mxu0
      %v525 = vadd.f32 0.0, %v524
      %v526 = vpop.f32.mrb[0].mxu0
      %527 = vmatprep.mubr.bf16.mxu0 0
      %528 = vmatmul.mubr.bf16.gmra.mrb[0].mxu0 %v471
      %v529 = vpop.f32.mrb[0].mxu0
      %v530 = vadd.f32 0.0, %v529
      %v531 = vpop.f32.mrb[0].mxu0
      %v532 = vpop.f32.mrb[0].mxu0
      %v533 = vadd.f32 0.0, %v532
      %v534 = vpop.f32.mrb[0].mxu0
      %535 = vmatprep.mubr.bf16.mxu0 0
      %536 = vmatmul.mubr.bf16.gmra.mrb[0].mxu0 %v474
      %v537 = vpop.f32.mrb[0].mxu0
      %v538 = vadd.f32 0.0, %v537
      %v539 = vpop.f32.mrb[0].mxu0
      %v540 = vpop.f32.mrb[0].mxu0
      %v541 = vadd.f32 0.0, %v540
      %v542 = vpop.f32.mrb[0].mxu0
      %543 = vdwg.mxu0
      %v544 = vadd.f32 %v420, %v514
      %v545 = vadd.f32 %v423, %v517
      %v546 = vadd.f32 %v428, %v522
      %v547 = vadd.f32 %v431, %v525
      %v548 = vadd.f32 %v436, %v530
      %v549 = vadd.f32 %v439, %v533
      %v550 = vadd.f32 %v444, %v538
      %v551 = vadd.f32 %v447, %v541
      %552 = vst [vmem:[%s208] sm:$0xff] %v544
      %553 = vst [vmem:[%s208 + $0x8] sm:$0xff] %v545
      %554 = vst [vmem:[%s208 + $0x10] sm:$0xff] %v546
      %555 = vst [vmem:[%s208 + $0x18] sm:$0xff] %v547
      %556 = vst [vmem:[%s208 + $0x20] sm:$0xff] %v548
      %557 = vst [vmem:[%s208 + $0x28] sm:$0xff] %v549
      %558 = vst [vmem:[%s208 + $0x30] sm:$0xff] %v550
      %559 = vst [vmem:[%s208 + $0x38] sm:$0xff] %v551
      %v560 = vadd.f32 %v544, %v545
      %v561 = vadd.f32 %v560, %v546
      %v562 = vadd.f32 %v561, %v547
      %v563 = vadd.f32 %v562, %v548
      %v564 = vadd.f32 %v563, %v549
      %v565 = vadd.f32 %v564, %v550
      %v566 = vadd.f32 %v565, %v551
      %v567 = vrot.slane %v566, 4
      %v568 = vadd.f32 %v566, %v567
      %v569 = vrot.slane %v568, 2
      %v570 = vadd.f32 %v568, %v569
      %v571 = vrot.slane %v570, 1
      %v572 = vadd.f32 %v570, %v571
      %573 = vst [vmem:[%s211] sm:$0x1] %v572
      %v574 = vmul.f32 %v544, %v544
      %v575 = vmul.f32 %v545, %v545
      %v576 = vmul.f32 %v546, %v546
      %v577 = vmul.f32 %v547, %v547
      %v578 = vmul.f32 %v548, %v548
      %v579 = vmul.f32 %v549, %v549
      %v580 = vmul.f32 %v550, %v550
      %v581 = vmul.f32 %v551, %v551
      %v582 = vadd.f32 %v574, %v575
      %v583 = vadd.f32 %v582, %v576
      %v584 = vadd.f32 %v583, %v577
      %v585 = vadd.f32 %v584, %v578
      %v586 = vadd.f32 %v585, %v579
      %v587 = vadd.f32 %v586, %v580
      %v588 = vadd.f32 %v587, %v581
      %v589 = vrot.slane %v588, 4
      %v590 = vadd.f32 %v588, %v589
      %v591 = vrot.slane %v590, 2
      %v592 = vadd.f32 %v590, %v591
      %v593 = vrot.slane %v592, 1
      %v594 = vadd.f32 %v592, %v593
      %595 = vst [vmem:[%s214] sm:$0x1] %v594
      %p596 = scmp.lt.s32.totalorder %s16, 1
      %s597 = scalar_select %p596, %s16, 1
      %s598 = smul.addr %s597, 8
      %s599 = smul.addr %s598, 8
      %s600 = scalar_lea.vmem %s2, %s599
      %p601 = scmp.lt.s32.totalorder %s16, 1
      %s602 = scalar_select %p601, %s16, 1
      %s603 = scalar_lea.vmem %s3, %s602
      %p604 = scmp.lt.s32.totalorder %s16, 1
      %s605 = scalar_select %p604, %s16, 1
      %s606 = scalar_lea.vmem %s4, %s605
      // Predicated region
      $region29: #{convk3_stride_downsampling.2} parent=27 // pred_check
        %p607 = pneg %p81
      $region30: #{convk3_stride_downsampling.2} parent=27 // pred_check_branch
        %609 = sbr.rel (%p607) target = $region32
      $region31: #{convk3_stride_downsampling.2} parent=27 // pred_region
        _
      $region32: #{convk3_stride_downsampling.2} parent=27 // pred_fallthru
        _
      // Predicated region
      $region33: #{convk3_stride_downsampling.2} parent=27 // pred_check
        %p610 = pneg %p107
      $region34: #{convk3_stride_downsampling.2} parent=27 // pred_check_branch
        %612 = sbr.rel (%p610) target = $region36
      $region35: #{convk3_stride_downsampling.2} parent=27 // pred_region
        _
      $region36: #{convk3_stride_downsampling.2} parent=27 // pred_fallthru
        _
      // Predicated region
      $region37: #{convk3_stride_downsampling.2} parent=27 // pred_check
        %p613 = pneg %p133
      $region38: #{convk3_stride_downsampling.2} parent=27 // pred_check_branch
        %615 = sbr.rel (%p613) target = $region40
      $region39: #{convk3_stride_downsampling.2} parent=27 // pred_region
        _
      $region40: #{convk3_stride_downsampling.2} parent=27 // pred_fallthru
        _
    $region28: #{convk3_stride_downsampling.2} parent=5 // pred_fallthru
      _
    %p616 = scmp.le.s32.totalorder 2, %s11
    // Predicated region
    $region41: #{convk3_stride_downsampling.2} parent=5 // pred_check
      %p617 = pneg %p616
    $region42: #{convk3_stride_downsampling.2} parent=5 // pred_check_branch
      %619 = sbr.rel (%p617) target = $region44
    $region43: #{convk3_stride_downsampling.2} parent=5 // pred_region
      %s620 = ssub.s32 %s11, 2
      // Predicated region
      $region45: #{convk3_stride_downsampling.2} parent=43 // pred_check
        %p621 = pneg %p87
      $region46: #{convk3_stride_downsampling.2} parent=43 // pred_check_branch
        %623 = sbr.rel (%p621) target = $region48
      $region47: #{convk3_stride_downsampling.2} parent=43 // pred_region
        %p624 = scmp.lt.s32.totalorder %s17, 1
        %s625 = scalar_select %p624, %s17, 1
        %s626 = smul.addr %s625, 8
        %s627 = smul.addr %s626, 8
        %s628 = scalar_lea.vmem %s2, %s627
      $region48: #{convk3_stride_downsampling.2} parent=43 // pred_fallthru
        _
      // Predicated region
      $region49: #{convk3_stride_downsampling.2} parent=43 // pred_check
        %p629 = pneg %p113
      $region50: #{convk3_stride_downsampling.2} parent=43 // pred_check_branch
        %631 = sbr.rel (%p629) target = $region52
      $region51: #{convk3_stride_downsampling.2} parent=43 // pred_region
        %p632 = scmp.lt.s32.totalorder %s17, 1
        %s633 = scalar_select %p632, %s17, 1
        %s634 = scalar_lea.vmem %s3, %s633
      $region52: #{convk3_stride_downsampling.2} parent=43 // pred_fallthru
        _
      // Predicated region
      $region53: #{convk3_stride_downsampling.2} parent=43 // pred_check
        %p635 = pneg %p139
      $region54: #{convk3_stride_downsampling.2} parent=43 // pred_check_branch
        %637 = sbr.rel (%p635) target = $region56
      $region55: #{convk3_stride_downsampling.2} parent=43 // pred_region
        %p638 = scmp.lt.s32.totalorder %s17, 1
        %s639 = scalar_select %p638, %s17, 1
        %s640 = scalar_lea.vmem %s4, %s639
      $region56: #{convk3_stride_downsampling.2} parent=43 // pred_fallthru
        _
    $region44: #{convk3_stride_downsampling.2} parent=5 // pred_fallthru
      _
  $region6: #{convk3_stride_downsampling.2} parent=0 // loop_footer
    %s15 = sadd.s32 1, %s11
  $region7: #{convk3_stride_downsampling.2} parent=0 // loop_footer_branch
    %10 = sbr.rel target = $region3
  $region8: #{convk3_stride_downsampling.2} parent=0 // loop_exit
    _

</llo_original>
